<compile_context>
chip_gen: v5e
topology: v5e:2x2
jax: 0.10.0
libtpu: 0.0.40
codegen_flags: <defaults>
</compile_context>

<pallas_src>
import numpy as np
import jax
import jax.numpy as jnp
from jax.experimental import pallas as pl
from jax.experimental.pallas import tpu as pltpu


def _round_up(x: int, m: int) -> int:
    return (x + m - 1) // m * m


def cosine_embedding_kernel(taus_ref, ipi_ref, w_ref, b_ref, out_ref):
    # taus_ref: (M_pad, 1) resident; ipi_ref: (1, K); w_ref: (K, E);
    # b_ref: (1, E); out_ref: (tm, E)
    tm = out_ref.shape[0]
    start = pl.multiple_of(pl.program_id(0) * tm, tm)
    taus = taus_ref[pl.ds(start, tm), :]                                  # (tm, 1)
    cosines = jnp.cos(taus * ipi_ref[...])                                # (tm, K)
    y = jnp.dot(cosines, w_ref[...], preferred_element_type=jnp.float32)  # (tm, E)
    y = y + b_ref[...]
    out_ref[...] = jnp.maximum(y, 0.0).astype(out_ref.dtype)


def cosine_embedding_forward(taus, weight_t, bias, *, tm=None):
    """taus: (B, N); weight_t: (num_cosines, embed) [= PyTorch W transposed];
    bias: (embed,). Returns (B, N, embed) float32."""
    B, N = taus.shape
    K, E = weight_t.shape
    M = B * N

    if tm is None:
        if M <= 1024:
            # Tiny problem: one grid step, just keep sublane alignment.
            tm = max(8, _round_up(M, 8))
        else:
            # Large problem: big row tile (multiple of 256 -> clean MXU cadence),
            # and >= 2 grid steps so v7x can split rows across both TensorCores.
            tm = 512
    M_pad = _round_up(M, tm)
    grid = M_pad // tm

    taus_flat = taus.reshape(M, 1).astype(jnp.float32)
    if M_pad != M:
        taus_flat = jnp.pad(taus_flat, ((0, M_pad - M), (0, 0)))
    i_pi = (jnp.pi * jnp.arange(1, K + 1, dtype=jnp.float32)).reshape(1, K)
    weight_t = weight_t.astype(jnp.float32)
    bias2d = bias.reshape(1, E).astype(jnp.float32)

    cost = pl.CostEstimate(
        flops=2 * M_pad * K * E,
        transcendentals=M_pad * K,
        bytes_accessed=4 * (M_pad + K + K * E + E + M_pad * E),
    )

    out_flat = pl.pallas_call(
        cosine_embedding_kernel,
        out_shape=jax.ShapeDtypeStruct((M_pad, E), jnp.float32),
        grid_spec=pltpu.PrefetchScalarGridSpec(
            num_scalar_prefetch=0,
            grid=(grid,),
            in_specs=[
                pl.BlockSpec((M_pad, 1), lambda i: (0, 0)),  # taus, resident
                pl.BlockSpec((1, K), lambda i: (0, 0)),      # i*pi row, resident
                pl.BlockSpec((K, E), lambda i: (0, 0)),      # full weight
                pl.BlockSpec((1, E), lambda i: (0, 0)),      # bias row
            ],
            out_specs=pl.BlockSpec((tm, E), lambda i: (i, 0)),
        ),
        compiler_params=pltpu.CompilerParams(
            dimension_semantics=("parallel",),
        ),
        cost_estimate=cost,
    )(taus_flat, i_pi, weight_t, bias2d)

    if M_pad != M:
        out_flat = out_flat[:M]
    return out_flat.reshape(B, N, E)


def reference_forward(taus, weight_t, bias):
    B, N = taus.shape
    K, E = weight_t.shape
    i_pi = jnp.pi * jnp.arange(1, K + 1, dtype=taus.dtype).reshape(1, 1, K)
    cosines = jnp.cos(taus.reshape(B, N, 1) * i_pi).reshape(B * N, K)
    y = jnp.maximum(cosines @ weight_t + bias, 0.0)
    return y.reshape(B, N, E)


if __name__ == "__main__":
    # Module hyper-params (kept TPU-tile friendly and small).
    num_cosines = 64
    embedding_dim = 128
    batch_size = 2
    num_taus = 8  # N

    key = jax.random.PRNGKey(0)
    k_tau, k_w, k_b = jax.random.split(key, 3)

    # taus are quantile fractions in [0, 1].
    taus = jax.random.uniform(k_tau, (batch_size, num_taus), dtype=jnp.float32)

    # PyTorch-style Linear init: U(-1/sqrt(fan_in), 1/sqrt(fan_in)).
    bound = 1.0 / np.sqrt(num_cosines)
    weight_t = jax.random.uniform(
        k_w, (num_cosines, embedding_dim), minval=-bound, maxval=bound,
        dtype=jnp.float32)
    bias = jax.random.uniform(
        k_b, (embedding_dim,), minval=-bound, maxval=bound, dtype=jnp.float32)

    out = cosine_embedding_forward(taus, weight_t, bias)
    out = jax.block_until_ready(out)

    ref = reference_forward(taus, weight_t, bias)
    np.testing.assert_allclose(np.asarray(out), np.asarray(ref),
                               rtol=1e-5, atol=1e-5)
    assert out.shape == (batch_size, num_taus, embedding_dim)

    # Also exercise a larger, non-multiple row count (padding + multi-step grid).
    B2, N2 = 37, 41  # M = 1517 -> tm=512, grid=3, padded to 1536
    taus2 = jax.random.uniform(jax.random.PRNGKey(1), (B2, N2), dtype=jnp.float32)
    out2 = jax.block_until_ready(cosine_embedding_forward(taus2, weight_t, bias))
    ref2 = reference_forward(taus2, weight_t, bias)
    np.testing.assert_allclose(np.asarray(out2), np.asarray(ref2),
                               rtol=1e-5, atol=1e-5)

    print("KERNEL_OK")
</pallas_src>

<mosaic_0001>
module attributes {stable_mosaic.version = 11 : i64} {
  func.func @cosine_embedding_kernel(%arg0: i32, %arg1: memref<16x1xf32, #tpu.memory_space<vmem>>, %arg2: memref<1x64xf32, #tpu.memory_space<vmem>>, %arg3: memref<64x128xf32, #tpu.memory_space<vmem>>, %arg4: memref<1x128xf32, #tpu.memory_space<vmem>>, %arg5: memref<16x128xf32, #tpu.memory_space<vmem>>) attributes {dimension_semantics = [#tpu.dimension_semantics<parallel>], iteration_bounds = array<i64: 1>, scalar_prefetch = 0 : i64, scratch_operands = 0 : i64, tpu.core_type = #tpu.core_type<tc>, window_params = [{pipeline_mode = #tpu.pipeline_mode<synchronous>, transform_indices = @transform_0, window_bounds = array<i64: 16, 1>}, {pipeline_mode = #tpu.pipeline_mode<synchronous>, transform_indices = @transform_1, window_bounds = array<i64: 1, 64>}, {pipeline_mode = #tpu.pipeline_mode<synchronous>, transform_indices = @transform_2, window_bounds = array<i64: 64, 128>}, {pipeline_mode = #tpu.pipeline_mode<synchronous>, transform_indices = @transform_3, window_bounds = array<i64: 1, 128>}, {transform_indices = @transform_4, window_bounds = array<i64: 16, 128>}]} {
    %c16_i32 = arith.constant 16 : i32
    %0 = arith.muli %arg0, %c16_i32 : i32
    %1 = tpu.assume_multiple %0, 16 : i32
    %2 = arith.index_cast %1 : i32 to index
    %c0 = arith.constant 0 : index
    %3 = vector.load %arg1[%2, %c0] : memref<16x1xf32, #tpu.memory_space<vmem>>, vector<16x1xf32>
    %c0_0 = arith.constant 0 : index
    %c0_1 = arith.constant 0 : index
    %4 = vector.load %arg2[%c0_0, %c0_1] : memref<1x64xf32, #tpu.memory_space<vmem>>, vector<1x64xf32>
    %5 = vector.broadcast %3 : vector<16x1xf32> to vector<16x64xf32>
    %6 = vector.broadcast %4 : vector<1x64xf32> to vector<16x64xf32>
    %7 = arith.mulf %5, %6 : vector<16x64xf32>
    %8 = math.cos %7 : vector<16x64xf32>
    %c0_2 = arith.constant 0 : index
    %c0_3 = arith.constant 0 : index
    %9 = vector.load %arg3[%c0_2, %c0_3] : memref<64x128xf32, #tpu.memory_space<vmem>>, vector<64x128xf32>
    %cst = arith.constant dense<0.000000e+00> : vector<16x128xf32>
    %10 = tpu.matmul %8, %9, %cst {dimension_numbers = #tpu.dot_dimension_numbers<[1], [0], [0], [1], [0, 0, 1, 1], [], []>} : vector<16x64xf32>, vector<64x128xf32>, vector<16x128xf32> -> vector<16x128xf32>
    %c0_4 = arith.constant 0 : index
    %c0_5 = arith.constant 0 : index
    %11 = vector.load %arg4[%c0_4, %c0_5] : memref<1x128xf32, #tpu.memory_space<vmem>>, vector<1x128xf32>
    %12 = vector.broadcast %11 : vector<1x128xf32> to vector<16x128xf32>
    %13 = arith.addf %10, %12 : vector<16x128xf32>
    %cst_6 = arith.constant 0.000000e+00 : f32
    %14 = vector.broadcast %cst_6 : f32 to vector<16x128xf32>
    %15 = arith.maximumf %13, %14 : vector<16x128xf32>
    %c0_7 = arith.constant 0 : index
    %c0_8 = arith.constant 0 : index
    %16 = vector.load %arg5[%c0_7, %c0_8] : memref<16x128xf32, #tpu.memory_space<vmem>>, vector<16x128xf32>
    tpu.vector_store %arg5[%c0_7, %c0_8], %15 {strides = array<i32>} : memref<16x128xf32, #tpu.memory_space<vmem>>, vector<16x128xf32>,
    return
  }
  func.func @transform_0(%arg0: i32) -> (i32, i32) {
    %c0_i32 = arith.constant 0 : i32
    %c0_i32_0 = arith.constant 0 : i32
    %c0_i32_1 = arith.constant 0 : i32
    return %c0_i32, %c0_i32_0 : i32, i32
  }
  func.func @transform_1(%arg0: i32) -> (i32, i32) {
    %c0_i32 = arith.constant 0 : i32
    %c0_i32_0 = arith.constant 0 : i32
    %c0_i32_1 = arith.constant 0 : i32
    return %c0_i32, %c0_i32_0 : i32, i32
  }
  func.func @transform_2(%arg0: i32) -> (i32, i32) {
    %c0_i32 = arith.constant 0 : i32
    %c0_i32_0 = arith.constant 0 : i32
    %c0_i32_1 = arith.constant 0 : i32
    return %c0_i32, %c0_i32_0 : i32, i32
  }
  func.func @transform_3(%arg0: i32) -> (i32, i32) {
    %c0_i32 = arith.constant 0 : i32
    %c0_i32_0 = arith.constant 0 : i32
    %c0_i32_1 = arith.constant 0 : i32
    return %c0_i32, %c0_i32_0 : i32, i32
  }
  func.func @transform_4(%arg0: i32) -> (i32, i32) {
    %c0_i32 = arith.constant 0 : i32
    %c0_i32_0 = arith.constant 0 : i32
    return %arg0, %c0_i32 : i32, i32
  }
}

</mosaic_0001>

<llo_original>
// kernel: tpu_custom_call.1
$region0: #{tpu_custom_call.1}
  #allocation0 [shape = 'u32[]', space=smem, size = 0x4, offset = 0x4, fixed_abs, tag = 'smem constant byte address 0x4 - core index']
  #allocation1 [shape = 'u32[72,128]{1,0:T(1,128)}', space=vmem, size = 0x9000, scoped, tag = 'internal scratch']
  %s0 = inlined_call_operand.vmem [shape: f32[16,1], index: 0, kind: input, shape index: {}]
  %s1 = inlined_call_operand.vmem [shape: f32[1,64], index: 1, kind: input, shape index: {}]
  %s2 = inlined_call_operand.hbm [shape: f32[64,128], index: 2, kind: input, shape index: {}]
  %s3 = inlined_call_operand.vmem [shape: f32[1,128], index: 3, kind: input, shape index: {}]
  %s4 = inlined_call_operand.hbm [shape: f32[16,128], index: 4, kind: output, shape index: {}]
  %s5 = sld [smem:[#allocation0]]
  $region30: #{tpu_custom_call.1} parent=0
    _
  %s7 = ssub.s32 1, %s5
  %s8 = scalar_select 0, %s7, %s5
  $region1: #{tpu_custom_call.1} parent=0
    #allocation2 [shape = 'u8[32768]{0}', space=vmem, size = 0x8000, scoped, tag = 'input window, operand 2, single buffered']
    #allocation3 [shape = 's32[1]{0}', space=sflag, size = 0x4, scoped, tag = 'scoped memory for tpu_custom_call.1']
    #allocation4 [shape = 's32[1]{0}', space=sflag, size = 0x4, scoped, tag = 'scoped memory for tpu_custom_call.1']
    #allocation5 [shape = 'u8[8192]{0}', space=vmem, size = 0x2000, scoped, tag = 'output window, operand 0, single buffered']
    %9 = vsyncpa [#allocation3], 0
    %10 = vsyncpa [#allocation4], 0
    // Predicated region
    $region2: #{tpu_custom_call.1} parent=1 // pred_check
      _
    $region3: #{tpu_custom_call.1} parent=1 // pred_check_branch
      %12 = sbr.rel (0) target = $region5
    $region4: #{tpu_custom_call.1} parent=1 // pred_region
      _
    $region5: #{tpu_custom_call.1} parent=1 // pred_fallthru
      _
    // Predicated region
    $region6: #{tpu_custom_call.1} parent=1 // pred_check
      _
    $region7: #{tpu_custom_call.1} parent=1 // pred_check_branch
      %14 = sbr.rel (0) target = $region9
    $region8: #{tpu_custom_call.1} parent=1 // pred_region
      _
    $region9: #{tpu_custom_call.1} parent=1 // pred_fallthru
      _
    // Predicated region
    $region10: #{tpu_custom_call.1} parent=1 // pred_check
      _
    $region11: #{tpu_custom_call.1} parent=1 // pred_check_branch
      %16 = sbr.rel (0) target = $region13
    $region12: #{tpu_custom_call.1} parent=1 // pred_region
      %18 = vsyncadd [#allocation3], 0
      %s19 = sshll.u32 %s2, 4
      %s20 = int_to_ptr.hbm [resolvable:$true] %s19
      %s21 = sshll.u32 [#allocation2], 4
      %s22 = int_to_ptr.vmem [resolvable:$true] %s21
      %27 = dma.hbm_to_vmem [thread:$0]  %s20, 1024, %s22, [#allocation3], 128, 128, 8
    $region13: #{tpu_custom_call.1} parent=1 // pred_fallthru
      _
    // Predicated region
    $region14: #{tpu_custom_call.1} parent=1 // pred_check
      _
    $region15: #{tpu_custom_call.1} parent=1 // pred_check_branch
      %29 = sbr.rel (0) target = $region17
    $region16: #{tpu_custom_call.1} parent=1 // pred_region
      _
    $region17: #{tpu_custom_call.1} parent=1 // pred_fallthru
      _
    // Predicated region
    $region18: #{tpu_custom_call.1} parent=1 // pred_check
      _
    $region19: #{tpu_custom_call.1} parent=1 // pred_check_branch
      %31 = sbr.rel (0) target = $region21
    $region20: #{tpu_custom_call.1} parent=1 // pred_region
      %33 = dma.done [#allocation3], 1024
    $region21: #{tpu_custom_call.1} parent=1 // pred_fallthru
      _
    %s34 = smul.u32 0, 16
    %s35 = scalar_lea.vmem %s0, %s34
    %v36 = vld [vmem:[%s35] sm:$0xff]
    %v37 = vld [vmem:[%s35 + $0x8] sm:$0xff]
    %v38 = vld [vmem:[%s1] sm:$0x1]
    %40 = vset.pattern.permute.xlu0 0
    %41 = vperm.xlu0 %40, %v36
    %v42 = vpop.permute.xlu0 %41
    %45 = vset.pattern.permute.xlu0 0
    %46 = vperm.xlu0 %45, %v37
    %v47 = vpop.permute.xlu0 %46
    %v50 = vperm.slane %v38, 0
    %v52 = vmul.f32 %v42, %v50
    %v53 = vmul.f32 %v47, %v50
    %v54 = vand.u32 2147483647, %v52
    %vm55 = vcmp.le.f32.partialorder %v54, 0.7853982
    %vm56 = vcmp.lt.s32.totalorder %v52, 0
    %v57 = vand.u32 %v52, 2139095040
    %v58 = vshrl.u32 %v57, 23
    %v59 = vsub.s32 %v58, 127
    %v60 = vand.u32 2147483647, %v52
    %v61 = vand.u32 %v60, 8388607
    %v62 = vor.u32 %v61, 8388608
    %v63 = vsub.s32 0, %v62
    %v64 = vadd.s32 %v59, 1
    %vm65 = vcmp.gt.s32.totalorder %v64, 0
    %v66 = vsel %vm65, %v64, 0
    %v67 = vshrl.u32 %v66, 5
    %v68 = vand.u32 %v66, 31
    %v69 = vsub.s32 32, %v68
    %v70 = vshrl.u32 683565275, %v69
    %v71 = vshll.u32 683565275, %v68
    %v72 = vshrl.u32 2475754826, %v69
    %v73 = vor.u32 %v71, %v72
    %v74 = vshll.u32 2475754826, %v68
    %v75 = vshrl.u32 2131351028, %v69
    %v76 = vor.u32 %v74, %v75
    %v77 = vshll.u32 2131351028, %v68
    %v78 = vshrl.u32 2102212464, %v69
    %v79 = vor.u32 %v77, %v78
    %v80 = vshll.u32 2102212464, %v68
    %v81 = vshrl.u32 920167782, %v69
    %v82 = vor.u32 %v80, %v81
    %v83 = vshll.u32 920167782, %v68
    %v84 = vshrl.u32 1326507024, %v69
    %v85 = vor.u32 %v83, %v84
    %vm86 = vcmp.lt.s32.totalorder %v67, 1
    %vm87 = vcmp.lt.s32.totalorder %v67, 2
    %vm88 = vcmp.lt.s32.totalorder %v67, 3
    %vm89 = vcmp.lt.s32.totalorder %v67, 4
    %v90 = vsel %vm86, %v70, %v73
    %v91 = vsel %vm89, %v79, 2102212464
    %v92 = vsel %vm88, %v76, %v91
    %v93 = vsel %vm87, %v90, %v92
    %v94 = vsel %vm86, %v73, %v76
    %v95 = vsel %vm89, %v82, 920167782
    %v96 = vsel %vm88, %v79, %v95
    %v97 = vsel %vm87, %v94, %v96
    %v98 = vsel %vm86, %v76, %v79
    %v99 = vsel %vm89, %v85, 1326507024
    %v100 = vsel %vm88, %v82, %v99
    %v101 = vsel %vm87, %v98, %v100
    %v102 = vshll.u32 %v62, 8
    %v103 = vand.u32 %v102, 65535
    %v104 = vshrl.u32 %v102, 16
    %v105 = vand.u32 %v101, 65535
    %v106 = vshrl.u32 %v101, 16
    %v107 = vmul.u32 %v103, %v105
    %v108 = vmul.u32 %v103, %v106
    %v109 = vmul.u32 %v104, %v105
    %v110 = vmul.u32 %v104, %v106
    %v111 = vshll.u32 %v108, 16
    %v112 = vshrl.u32 %v108, 16
    %v113 = vshll.u32 %v109, 16
    %v114 = vshrl.u32 %v109, 16
    %vm115 = vc.u32 %v107, %v111
    %v116 = vsel %vm115, 1, 0
    %v117 = vadd.s32 %v107, %v111
    %v118 = vadd.s32 %v110, %v116
    %vm119 = vc.u32 %v117, %v113
    %v120 = vsel %vm119, 1, 0
    %v121 = vadd.s32 %v117, %v113
    %v122 = vadd.s32 %v118, %v120
    %v123 = vadd.s32 %v122, %v112
    %v124 = vadd.s32 %v123, %v114
    %v125 = vand.u32 %v102, 65535
    %v126 = vshrl.u32 %v102, 16
    %v127 = vand.u32 %v97, 65535
    %v128 = vshrl.u32 %v97, 16
    %v129 = vmul.u32 %v125, %v127
    %v130 = vmul.u32 %v125, %v128
    %v131 = vmul.u32 %v126, %v127
    %v132 = vmul.u32 %v126, %v128
    %v133 = vshll.u32 %v130, 16
    %v134 = vshrl.u32 %v130, 16
    %v135 = vshll.u32 %v131, 16
    %v136 = vshrl.u32 %v131, 16
    %vm137 = vc.u32 %v129, %v133
    %v138 = vsel %vm137, 1, 0
    %v139 = vadd.s32 %v129, %v133
    %v140 = vadd.s32 %v132, %v138
    %vm141 = vc.u32 %v139, %v135
    %v142 = vsel %vm141, 1, 0
    %v143 = vadd.s32 %v139, %v135
    %v144 = vadd.s32 %v140, %v142
    %v145 = vadd.s32 %v144, %v134
    %v146 = vadd.s32 %v145, %v136
    %v147 = vmul.u32 %v102, %v93
    %v148 = vadd.s32 %v124, %v143
    %vm149 = vc.u32 %v124, %v143
    %v150 = vadd.s32 %v146, 1
    %v151 = vsel %vm149, %v150, %v146
    %v152 = vadd.s32 %v147, %v151
    %v153 = vadd.s32 %v152, 536870912
    %v154 = vshrl.u32 %v153, 30
    %v155 = vshll.u32 %v154, 30
    %v156 = vsub.s32 %v152, %v155
    %vm157 = vcmp.lt.s32.totalorder %v156, 0
    %v158 = vsub.s32 0, %v156
    %v159 = vsel %vm157, %v158, %v156
    %v160 = vclz %v159
    %v161 = vsub.s32 %v160, 2
    %vm162 = vcmp.gt.s32.totalorder 0, %v161
    %v163 = vsel %vm162, 0, %v161
    %v164 = vsub.s32 32, %v163
    %v165 = vshll.u32 %v156, %v163
    %v166 = vshrl.u32 %v148, %v164
    %v167 = vor.u32 %v165, %v166
    %v168 = vsub.s32 4294967266, %v163
    %v169 = vadd.s32 %v168, 127
    %v170 = vshll.u32 %v169, 23
    %v171 = vor.u32 4788187, %v170
    %v172 = vand.u32 2147483647, %v171
    %v174 = vcvt.s32.f32 %v167
    %v175 = vmul.f32 %v174, %v172
    %v176 = vxor.u32 %v175, 2147483648
    %v177 = vsel %vm56, %v176, %v175
    %v178 = vsub.s32 4, %v154
    %v179 = vsel %vm56, %v178, %v154
    %v180 = vsel %vm55, %v52, %v177
    %v181 = vsel %vm55, 0, %v179
    %v182 = vmul.f32 %v180, %v180
    %v183 = vmul.f32 %v182, -0.001358992
    %v184 = vadd.f32 %v183, 0.041655596
    %v185 = vmul.f32 %v182, %v184
    %v186 = vadd.f32 %v185, -0.4999988
    %v187 = vmul.f32 %v182, %v186
    %v188 = vadd.f32 1.0, %v187
    %v189 = vmul.f32 %v180, %v180
    %v190 = vmul.f32 %v189, -0.00019511016
    %v191 = vadd.f32 %v190, 0.008332121
    %v192 = vmul.f32 %v189, %v191
    %v193 = vadd.f32 %v192, -0.16666654
    %v194 = vmul.f32 %v189, %v193
    %v195 = vadd.f32 %v194, 1.0
    %v196 = vmul.f32 %v195, %v180
    %vm197 = vweird.f32 %v52
    %v198 = vand.u32 %v181, 3
    %vm199 = vcmp.lt.s32.totalorder %v198, 2
    %vm200 = vcmp.eq.s32.totalorder %v198, 0
    %v201 = vxor.u32 %v196, 2147483648
    %v202 = vsel %vm200, %v188, %v201
    %vm203 = vcmp.eq.s32.totalorder %v198, 2
    %v204 = vxor.u32 %v188, 2147483648
    %v205 = vsel %vm203, %v204, %v196
    %v206 = vsel %vm199, %v202, %v205
    %v207 = vsel %vm197, nan, %v206
    %v208 = vand.u32 2147483647, %v53
    %vm209 = vcmp.le.f32.partialorder %v208, 0.7853982
    %vm210 = vcmp.lt.s32.totalorder %v53, 0
    %v211 = vand.u32 %v53, 2139095040
    %v212 = vshrl.u32 %v211, 23
    %v213 = vsub.s32 %v212, 127
    %v214 = vand.u32 2147483647, %v53
    %v215 = vand.u32 %v214, 8388607
    %v216 = vor.u32 %v215, 8388608
    %v217 = vsub.s32 0, %v216
    %v218 = vadd.s32 %v213, 1
    %vm219 = vcmp.gt.s32.totalorder %v218, 0
    %v220 = vsel %vm219, %v218, 0
    %v221 = vshrl.u32 %v220, 5
    %v222 = vand.u32 %v220, 31
    %v223 = vsub.s32 32, %v222
    %v224 = vshrl.u32 683565275, %v223
    %v225 = vshll.u32 683565275, %v222
    %v226 = vshrl.u32 2475754826, %v223
    %v227 = vor.u32 %v225, %v226
    %v228 = vshll.u32 2475754826, %v222
    %v229 = vshrl.u32 2131351028, %v223
    %v230 = vor.u32 %v228, %v229
    %v231 = vshll.u32 2131351028, %v222
    %v232 = vshrl.u32 2102212464, %v223
    %v233 = vor.u32 %v231, %v232
    %v234 = vshll.u32 2102212464, %v222
    %v235 = vshrl.u32 920167782, %v223
    %v236 = vor.u32 %v234, %v235
    %v237 = vshll.u32 920167782, %v222
    %v238 = vshrl.u32 1326507024, %v223
    %v239 = vor.u32 %v237, %v238
    %vm240 = vcmp.lt.s32.totalorder %v221, 1
    %vm241 = vcmp.lt.s32.totalorder %v221, 2
    %vm242 = vcmp.lt.s32.totalorder %v221, 3
    %vm243 = vcmp.lt.s32.totalorder %v221, 4
    %v244 = vsel %vm240, %v224, %v227
    %v245 = vsel %vm243, %v233, 2102212464
    %v246 = vsel %vm242, %v230, %v245
    %v247 = vsel %vm241, %v244, %v246
    %v248 = vsel %vm240, %v227, %v230
    %v249 = vsel %vm243, %v236, 920167782
    %v250 = vsel %vm242, %v233, %v249
    %v251 = vsel %vm241, %v248, %v250
    %v252 = vsel %vm240, %v230, %v233
    %v253 = vsel %vm243, %v239, 1326507024
    %v254 = vsel %vm242, %v236, %v253
    %v255 = vsel %vm241, %v252, %v254
    %v256 = vshll.u32 %v216, 8
    %v257 = vand.u32 %v256, 65535
    %v258 = vshrl.u32 %v256, 16
    %v259 = vand.u32 %v255, 65535
    %v260 = vshrl.u32 %v255, 16
    %v261 = vmul.u32 %v257, %v259
    %v262 = vmul.u32 %v257, %v260
    %v263 = vmul.u32 %v258, %v259
    %v264 = vmul.u32 %v258, %v260
    %v265 = vshll.u32 %v262, 16
    %v266 = vshrl.u32 %v262, 16
    %v267 = vshll.u32 %v263, 16
    %v268 = vshrl.u32 %v263, 16
    %vm269 = vc.u32 %v261, %v265
    %v270 = vsel %vm269, 1, 0
    %v271 = vadd.s32 %v261, %v265
    %v272 = vadd.s32 %v264, %v270
    %vm273 = vc.u32 %v271, %v267
    %v274 = vsel %vm273, 1, 0
    %v275 = vadd.s32 %v271, %v267
    %v276 = vadd.s32 %v272, %v274
    %v277 = vadd.s32 %v276, %v266
    %v278 = vadd.s32 %v277, %v268
    %v279 = vand.u32 %v256, 65535
    %v280 = vshrl.u32 %v256, 16
    %v281 = vand.u32 %v251, 65535
    %v282 = vshrl.u32 %v251, 16
    %v283 = vmul.u32 %v279, %v281
    %v284 = vmul.u32 %v279, %v282
    %v285 = vmul.u32 %v280, %v281
    %v286 = vmul.u32 %v280, %v282
    %v287 = vshll.u32 %v284, 16
    %v288 = vshrl.u32 %v284, 16
    %v289 = vshll.u32 %v285, 16
    %v290 = vshrl.u32 %v285, 16
    %vm291 = vc.u32 %v283, %v287
    %v292 = vsel %vm291, 1, 0
    %v293 = vadd.s32 %v283, %v287
    %v294 = vadd.s32 %v286, %v292
    %vm295 = vc.u32 %v293, %v289
    %v296 = vsel %vm295, 1, 0
    %v297 = vadd.s32 %v293, %v289
    %v298 = vadd.s32 %v294, %v296
    %v299 = vadd.s32 %v298, %v288
    %v300 = vadd.s32 %v299, %v290
    %v301 = vmul.u32 %v256, %v247
    %v302 = vadd.s32 %v278, %v297
    %vm303 = vc.u32 %v278, %v297
    %v304 = vadd.s32 %v300, 1
    %v305 = vsel %vm303, %v304, %v300
    %v306 = vadd.s32 %v301, %v305
    %v307 = vadd.s32 %v306, 536870912
    %v308 = vshrl.u32 %v307, 30
    %v309 = vshll.u32 %v308, 30
    %v310 = vsub.s32 %v306, %v309
    %vm311 = vcmp.lt.s32.totalorder %v310, 0
    %v312 = vsub.s32 0, %v310
    %v313 = vsel %vm311, %v312, %v310
    %v314 = vclz %v313
    %v315 = vsub.s32 %v314, 2
    %vm316 = vcmp.gt.s32.totalorder 0, %v315
    %v317 = vsel %vm316, 0, %v315
    %v318 = vsub.s32 32, %v317
    %v319 = vshll.u32 %v310, %v317
    %v320 = vshrl.u32 %v302, %v318
    %v321 = vor.u32 %v319, %v320
    %v322 = vsub.s32 4294967266, %v317
    %v323 = vadd.s32 %v322, 127
    %v324 = vshll.u32 %v323, 23
    %v325 = vor.u32 4788187, %v324
    %v326 = vand.u32 2147483647, %v325
    %v328 = vcvt.s32.f32 %v321
    %v329 = vmul.f32 %v328, %v326
    %v330 = vxor.u32 %v329, 2147483648
    %v331 = vsel %vm210, %v330, %v329
    %v332 = vsub.s32 4, %v308
    %v333 = vsel %vm210, %v332, %v308
    %v334 = vsel %vm209, %v53, %v331
    %v335 = vsel %vm209, 0, %v333
    %v336 = vmul.f32 %v334, %v334
    %v337 = vmul.f32 %v336, -0.001358992
    %v338 = vadd.f32 %v337, 0.041655596
    %v339 = vmul.f32 %v336, %v338
    %v340 = vadd.f32 %v339, -0.4999988
    %v341 = vmul.f32 %v336, %v340
    %v342 = vadd.f32 1.0, %v341
    %v343 = vmul.f32 %v334, %v334
    %v344 = vmul.f32 %v343, -0.00019511016
    %v345 = vadd.f32 %v344, 0.008332121
    %v346 = vmul.f32 %v343, %v345
    %v347 = vadd.f32 %v346, -0.16666654
    %v348 = vmul.f32 %v343, %v347
    %v349 = vadd.f32 %v348, 1.0
    %v350 = vmul.f32 %v349, %v334
    %vm351 = vweird.f32 %v53
    %v352 = vand.u32 %v335, 3
    %vm353 = vcmp.lt.s32.totalorder %v352, 2
    %vm354 = vcmp.eq.s32.totalorder %v352, 0
    %v355 = vxor.u32 %v350, 2147483648
    %v356 = vsel %vm354, %v342, %v355
    %vm357 = vcmp.eq.s32.totalorder %v352, 2
    %v358 = vxor.u32 %v342, 2147483648
    %v359 = vsel %vm357, %v358, %v350
    %v360 = vsel %vm353, %v356, %v359
    %v361 = vsel %vm351, nan, %v360
    %v362 = vld [vmem:[#allocation2] sm:$0xff]
    %v363 = vld [vmem:[#allocation2 + $0x8] sm:$0xff]
    %v364 = vld [vmem:[#allocation2 + $0x10] sm:$0xff]
    %v365 = vld [vmem:[#allocation2 + $0x18] sm:$0xff]
    %v366 = vld [vmem:[#allocation2 + $0x20] sm:$0xff]
    %v367 = vld [vmem:[#allocation2 + $0x28] sm:$0xff]
    %v368 = vld [vmem:[#allocation2 + $0x30] sm:$0xff]
    %v369 = vld [vmem:[#allocation2 + $0x38] sm:$0xff]
    %v370 = vld [vmem:[%s3] sm:$0x1]
    %v372 = vperm.slane %v370, 0
    %vm374 = vcmask 523264
    %v376 = vsel %vm374, %v207, 0
    %v379 = vsel %vm374, %v361, 0
    %381 = vmatpush.msra.mxu0 0.0
    %382 = vmatpush.msra.mxu0 0.0
    %383 = vmatpush.msra.mxu0 0.0
    %384 = vmatpush.msra.mxu0 0.0
    %385 = vmatpush.msra.mxu0 0.0
    %386 = vmatpush.msra.mxu0 0.0
    %387 = vmatpush.msra.mxu0 0.0
    %388 = vmatpush.msra.mxu0 0.0
    %389 = vmatpush.msra.mxu0 %v369
    %390 = vmatpush.msra.mxu0 %v368
    %391 = vmatpush.msra.mxu0 %v367
    %392 = vmatpush.msra.mxu0 %v366
    %393 = vmatpush.msra.mxu0 %v365
    %394 = vmatpush.msra.mxu0 %v364
    %395 = vmatpush.msra.mxu0 %v363
    %396 = vmatpush.msra.mxu0 %v362
    %397 = vmatmul.f32.gmra.mxu0 %v376
    %v398 = vpop.f32.mrf.mxu0
    %v399 = vadd.f32 %v372, %v398
    %400 = vmatmul.f32.gmra.mxu0 %v379
    %v401 = vpop.f32.mrf.mxu0
    %v402 = vadd.f32 %v372, %v401
    %403 = vdwg.mxu0
    %v404 = vmax.f32 %v399, 0.0
    %v405 = vmax.f32 %v402, 0.0
    %406 = vst [vmem:[#allocation5] sm:$0xff] %v404
    %407 = vst [vmem:[#allocation5 + $0x8] sm:$0xff] %v405
    // Predicated region
    $region22: #{tpu_custom_call.1} parent=1 // pred_check
      _
    $region23: #{tpu_custom_call.1} parent=1 // pred_check_branch
      %409 = sbr.rel (0) target = $region25
    $region24: #{tpu_custom_call.1} parent=1 // pred_region
      %411 = vsyncadd [#allocation4], 0
      %s412 = sshll.u32 [#allocation5], 4
      %s413 = int_to_ptr.vmem [resolvable:$true] %s412
      %s414 = sshll.u32 %s4, 4
      %s415 = int_to_ptr.hbm [resolvable:$true] %s414
      %420 = dma.vmem_to_hbm [thread:$0]  %s413, 256, %s415, [#allocation4], 128, 128, 8
    $region25: #{tpu_custom_call.1} parent=1 // pred_fallthru
      _
    // Predicated region
    $region26: #{tpu_custom_call.1} parent=1 // pred_check
      _
    $region27: #{tpu_custom_call.1} parent=1 // pred_check_branch
      %422 = sbr.rel (0) target = $region29
    $region28: #{tpu_custom_call.1} parent=1 // pred_region
      %424 = dma.done [#allocation4], 256
    $region29: #{tpu_custom_call.1} parent=1 // pred_fallthru
      _
    %425 = vsyncpa [#allocation3], 1
    %426 = vsyncpa [#allocation4], 1

</llo_original>
